<compile_context>
chip_gen: v7x
topology: tpu7x:2x2x1
jax: 0.10.0
libtpu: 0.0.40
codegen_flags: <defaults>
</compile_context>

<pallas_src>
import jax
import jax.numpy as jnp
from jax.experimental import pallas as pl
from jax.experimental.pallas import tpu as pltpu


def mha_kernel(x_ref, wt_ref, b_ref, out_ref):
    tb, s, h = x_ref.shape
    nh = wt_ref.shape[1]

    x = x_ref[...]                               # (TB, S, H), native dtype (bf16 ok)
    wt = wt_ref[...].astype(x.dtype)             # (H, NH)
    bias = b_ref[...].astype(jnp.float32)        # (1, NH)

    # ---- scores for all heads on the MXU: (TB*S, H) @ (H, NH) ----
    x2d = x.reshape(tb * s, h)                   # leading-dim collapse (no relayout)
    scores = jnp.dot(x2d, wt, preferred_element_type=jnp.float32)   # (TB*S, NH) f32
    scores = scores + bias                       # per-head bias (broadcast over rows)
    scores = scores.reshape(tb, s, nh)           # leading-dim split (no relayout)
    scores = jnp.swapaxes(scores, 1, 2)          # (TB, NH, S): S on the minor axis

    # ---- softmax over the sequence axis (minor axis), f32 on-chip ----
    m = jnp.max(scores, axis=-1, keepdims=True)
    e = jnp.exp(scores - m)
    denom = jnp.sum(e, axis=-1, keepdims=True)
    attn = e * pl.reciprocal(denom, approx=True)        # EUP, frees VALU slots

    # ---- context for all heads: batched MXU matmul over TB ----
    ctx = jnp.einsum("bns,bsh->bnh", attn.astype(x.dtype), x,
                     preferred_element_type=jnp.float32)            # (TB, NH, H)

    out_ref[...] = ctx.astype(out_ref.dtype)


def _pick_batch_tile(B, S, H, itemsize, vmem_budget_bytes=4 << 20):
    # Keep the double-buffered x tile comfortably inside scoped VMEM on all of
    # v5e / v6e / v7x (v7x has only 64 MiB physical, 32 MiB default scoped).
    per_batch_row = max(1, S * H * itemsize)
    return int(max(1, min(B, vmem_budget_bytes // per_batch_row)))


def multi_head_attention(x, W, b, *, batch_tile=None):
    """x: (B, S, H); W: (NH, H); b: (NH, 1). Returns (B, NH*H) in torch.cat order."""
    B, S, H = x.shape
    NH = W.shape[0]

    wt = W.T.astype(x.dtype)                   # (H, NH): contraction-ready, no in-kernel transpose
    b2 = b.reshape(1, NH).astype(jnp.float32)  # (1, NH)

    TB = batch_tile if batch_tile is not None else _pick_batch_tile(B, S, H, x.dtype.itemsize)
    TB = int(min(TB, B))
    grid = (pl.cdiv(B, TB),)

    out = pl.pallas_call(
        mha_kernel,
        out_shape=jax.ShapeDtypeStruct((B, NH, H), x.dtype),
        grid=grid,
        in_specs=[
            pl.BlockSpec((TB, S, H), lambda i: (i, 0, 0)),   # batch tile of x (pipelined)
            pl.BlockSpec((H, NH), lambda i: (0, 0)),         # full weight block, loaded once
            pl.BlockSpec((1, NH), lambda i: (0, 0)),         # full bias block
        ],
        out_specs=pl.BlockSpec((TB, NH, H), lambda i: (i, 0, 0)),
        compiler_params=pltpu.CompilerParams(
            dimension_semantics=("parallel",),               # batch tiles split across TCs on v7x
        ),
    )(x, wt, b2)

    # Head-major flatten == torch.cat([ctx_0, ..., ctx_{NH-1}], dim=1).
    return out.reshape(B, NH * H)


def multi_head_attention_ref(x, W, b):
    # Pure-JAX reference mirroring the PyTorch module head-by-head.
    outs = []
    for h in range(W.shape[0]):
        scores = jnp.einsum("bsh,h->bs", x, W[h]) + b[h, 0]          # (B, S)
        attn = jax.nn.softmax(scores, axis=1)[:, :, None]            # (B, S, 1)
        outs.append(jnp.sum(attn * x, axis=1))                       # (B, H)
    return jnp.concatenate(outs, axis=1)


if __name__ == "__main__":
    key = jax.random.PRNGKey(0)
    B, S, H, NH = 2, 8, 32, 4

    kx, kw, kb = jax.random.split(key, 3)
    x = jax.random.normal(kx, (B, S, H), dtype=jnp.float32)
    # Deterministic "nn.Linear(hidden_size, 1)"-shaped params per head.
    W = jax.random.normal(kw, (NH, H), dtype=jnp.float32) * 0.1
    b = jax.random.normal(kb, (NH, 1), dtype=jnp.float32) * 0.1

    out = multi_head_attention(x, W, b)
    out = jax.block_until_ready(out)

    ref = multi_head_attention_ref(x, W, b)
    assert out.shape == (B, NH * H), out.shape
    # Tolerance loosened slightly vs the exact-reciprocal version because the
    # softmax denominator now uses the EUP approximate reciprocal.
    assert jnp.allclose(out, ref, atol=2e-3, rtol=2e-3), "mismatch vs reference"

    print("KERNEL_OK")
</pallas_src>

<mosaic_0001>
module attributes {stable_mosaic.version = 11 : i64} {
  func.func @mha_kernel(%arg0: i32, %arg1: memref<2x8x32xf32, #tpu.memory_space<vmem>>, %arg2: memref<32x4xf32, #tpu.memory_space<vmem>>, %arg3: memref<1x4xf32, #tpu.memory_space<vmem>>, %arg4: memref<2x4x32xf32, #tpu.memory_space<vmem>>) attributes {dimension_semantics = [#tpu.dimension_semantics<parallel>], iteration_bounds = array<i64: 1>, scalar_prefetch = 0 : i64, scratch_operands = 0 : i64, tpu.core_type = #tpu.core_type<tc>, window_params = [{transform_indices = @transform_0, window_bounds = array<i64: 2, 8, 32>}, {pipeline_mode = #tpu.pipeline_mode<synchronous>, transform_indices = @transform_1, window_bounds = array<i64: 32, 4>}, {pipeline_mode = #tpu.pipeline_mode<synchronous>, transform_indices = @transform_2, window_bounds = array<i64: 1, 4>}, {transform_indices = @transform_3, window_bounds = array<i64: 2, 4, 32>}]} {
    %c0 = arith.constant 0 : index
    %c0_0 = arith.constant 0 : index
    %c0_1 = arith.constant 0 : index
    %0 = vector.load %arg1[%c0, %c0_0, %c0_1] : memref<2x8x32xf32, #tpu.memory_space<vmem>>, vector<2x8x32xf32>
    %c0_2 = arith.constant 0 : index
    %c0_3 = arith.constant 0 : index
    %1 = vector.load %arg2[%c0_2, %c0_3] : memref<32x4xf32, #tpu.memory_space<vmem>>, vector<32x4xf32>
    %c0_4 = arith.constant 0 : index
    %c0_5 = arith.constant 0 : index
    %2 = vector.load %arg3[%c0_4, %c0_5] : memref<1x4xf32, #tpu.memory_space<vmem>>, vector<1x4xf32>
    %3 = vector.shape_cast %0 : vector<2x8x32xf32> to vector<16x32xf32>
    %cst = arith.constant dense<0.000000e+00> : vector<16x4xf32>
    %4 = tpu.matmul %3, %1, %cst {dimension_numbers = #tpu.dot_dimension_numbers<[1], [0], [0], [1], [0, 0, 1, 1], [], []>} : vector<16x32xf32>, vector<32x4xf32>, vector<16x4xf32> -> vector<16x4xf32>
    %5 = vector.broadcast %2 : vector<1x4xf32> to vector<16x4xf32>
    %6 = arith.addf %4, %5 : vector<16x4xf32>
    %7 = vector.shape_cast %6 : vector<16x4xf32> to vector<2x8x4xf32>
    %8 = tpu.transpose %7, [0, 2, 1] : vector<2x8x4xf32> -> vector<2x4x8xf32>
    %cst_6 = arith.constant dense<0xFF800000> : vector<2x4xf32>
    %9 = vector.multi_reduction <maximumf>, %8, %cst_6 [2] : vector<2x4x8xf32> to vector<2x4xf32>
    %10 = vector.shape_cast %9 : vector<2x4xf32> to vector<2x4x1xf32>
    %11 = vector.broadcast %10 : vector<2x4x1xf32> to vector<2x4x8xf32>
    %12 = arith.subf %8, %11 : vector<2x4x8xf32>
    %13 = math.exp %12 : vector<2x4x8xf32>
    %cst_7 = arith.constant dense<0.000000e+00> : vector<2x4xf32>
    %14 = vector.multi_reduction <add>, %13, %cst_7 [2] : vector<2x4x8xf32> to vector<2x4xf32>
    %15 = vector.shape_cast %14 : vector<2x4xf32> to vector<2x4x1xf32>
    %16 = tpu.reciprocal %15 {approx = true} : vector<2x4x1xf32> -> vector<2x4x1xf32>
    %17 = vector.broadcast %16 : vector<2x4x1xf32> to vector<2x4x8xf32>
    %18 = arith.mulf %13, %17 : vector<2x4x8xf32>
    "tpu.trace_start"() <{level = 10 : i32, message = "bns,bsh->bnh"}> : () -> ()
    %cst_8 = arith.constant dense<0.000000e+00> : vector<2x4x32xf32>
    %19 = tpu.matmul %18, %0, %cst_8 {dimension_numbers = #tpu.dot_dimension_numbers<[2], [1], [1], [2], [0, 0, 0, 1, 1, 2], [0], [0]>} : vector<2x4x8xf32>, vector<2x8x32xf32>, vector<2x4x32xf32> -> vector<2x4x32xf32>
    "tpu.trace_stop"() : () -> ()
    %c0_9 = arith.constant 0 : index
    %c0_10 = arith.constant 0 : index
    %c0_11 = arith.constant 0 : index
    %20 = vector.load %arg4[%c0_9, %c0_10, %c0_11] : memref<2x4x32xf32, #tpu.memory_space<vmem>>, vector<2x4x32xf32>
    tpu.vector_store %arg4[%c0_9, %c0_10, %c0_11], %19 {strides = array<i32>} : memref<2x4x32xf32, #tpu.memory_space<vmem>>, vector<2x4x32xf32>,
    return
  }
  func.func @transform_0(%arg0: i32) -> (i32, i32, i32) {
    %c0_i32 = arith.constant 0 : i32
    %c0_i32_0 = arith.constant 0 : i32
    %c0_i32_1 = arith.constant 0 : i32
    return %arg0, %c0_i32, %c0_i32_0 : i32, i32, i32
  }
  func.func @transform_1(%arg0: i32) -> (i32, i32) {
    %c0_i32 = arith.constant 0 : i32
    %c0_i32_0 = arith.constant 0 : i32
    %c0_i32_1 = arith.constant 0 : i32
    return %c0_i32, %c0_i32_0 : i32, i32
  }
  func.func @transform_2(%arg0: i32) -> (i32, i32) {
    %c0_i32 = arith.constant 0 : i32
    %c0_i32_0 = arith.constant 0 : i32
    %c0_i32_1 = arith.constant 0 : i32
    return %c0_i32, %c0_i32_0 : i32, i32
  }
  func.func @transform_3(%arg0: i32) -> (i32, i32, i32) {
    %c0_i32 = arith.constant 0 : i32
    %c0_i32_0 = arith.constant 0 : i32
    %c0_i32_1 = arith.constant 0 : i32
    return %arg0, %c0_i32, %c0_i32_0 : i32, i32, i32
  }
}

</mosaic_0001>

<llo_original>
// kernel: tpu_custom_call.1
$region0: #{tpu_custom_call.1}
  #allocation0 [shape = 'u32[]', space=smem, size = 0x4, offset = 0x4, fixed_abs, tag = 'smem constant byte address 0x4 - core index']
  #allocation1 [shape = 'u32[144,128]{1,0:T(1,128)}', space=vmem, size = 0x12000, scoped, tag = 'internal scratch']
  %s0 = inlined_call_operand.vmem [shape: f32[2,8,32], index: 0, kind: input, shape index: {}]
  %s1 = inlined_call_operand.vmem [shape: f32[32,4], index: 1, kind: input, shape index: {}]
  %s2 = inlined_call_operand.vmem [shape: f32[1,4], index: 2, kind: input, shape index: {}]
  %s3 = inlined_call_operand.hbm [shape: f32[2,4,32], index: 3, kind: output, shape index: {}]
  %s4 = sld [smem:[#allocation0]]
  $region22: #{tpu_custom_call.1} parent=0
    _
  %s6 = ssub.s32 1, %s4
  %s7 = scalar_select 0, %s6, %s4
  $region1: #{tpu_custom_call.1} parent=0
    #allocation2 [shape = 'u8[4096]{0}', space=vmem, size = 0x1000, scoped, tag = 'output window, operand 0, single buffered']
    #allocation3 [shape = 's32[1]{0}', space=sflag, size = 0x4, scoped, tag = 'scoped memory for tpu_custom_call.1']
    %8 = vsyncpa [#allocation3], 0
    // Predicated region
    $region2: #{tpu_custom_call.1} parent=1 // pred_check
      _
    $region3: #{tpu_custom_call.1} parent=1 // pred_check_branch
      %10 = sbr.rel (0) target = $region5
    $region4: #{tpu_custom_call.1} parent=1 // pred_region
      _
    $region5: #{tpu_custom_call.1} parent=1 // pred_fallthru
      _
    // Predicated region
    $region6: #{tpu_custom_call.1} parent=1 // pred_check
      _
    $region7: #{tpu_custom_call.1} parent=1 // pred_check_branch
      %12 = sbr.rel (0) target = $region9
    $region8: #{tpu_custom_call.1} parent=1 // pred_region
      _
    $region9: #{tpu_custom_call.1} parent=1 // pred_fallthru
      _
    // Predicated region
    $region10: #{tpu_custom_call.1} parent=1 // pred_check
      _
    $region11: #{tpu_custom_call.1} parent=1 // pred_check_branch
      %14 = sbr.rel (0) target = $region13
    $region12: #{tpu_custom_call.1} parent=1 // pred_region
      _
    $region13: #{tpu_custom_call.1} parent=1 // pred_fallthru
      _
    %v15 = vld [vmem:[%s0] sm:$0xff]
    %v16 = vld [vmem:[%s0 + $0x8] sm:$0xff]
    %v17 = vld [vmem:[%s1] sm:$0xff]
    %v18 = vld [vmem:[%s1 + $0x8] sm:$0xff]
    %v19 = vld [vmem:[%s1 + $0x10] sm:$0xff]
    %v20 = vld [vmem:[%s1 + $0x18] sm:$0xff]
    %v21 = vld [vmem:[%s2] sm:$0x1]
    %v23 = vlaneseq
    %v24 = vshrl.u32 %v23, 7
    %v25 = vsub.s32 0, %v24
    %v26 = vrot.slane %v21, %v25
    %vm28 = vcmask 261120
    %v30 = vsel %vm28, %v15, 0
    %v33 = vsel %vm28, %v16, 0
    %35 = vmatprep.subr.mxu0 0.0
    %36 = vmatpush1.msra.mxu0 %v17
    %37 = vmatprep.subr.mxu0 0.0
    %38 = vmatpush1.msra.mxu0 %v18
    %39 = vmatprep.subr.mxu0 0.0
    %40 = vmatpush1.msra.mxu0 %v19
    %41 = vmatprep.subr.mxu0 0.0
    %42 = vmatpush1.msra.mxu0 %v20
    %43 = vmatprep.subr.mxu0 0.0
    %44 = vmatpush1.msra.mxu0 0.0
    %45 = vmatprep.subr.mxu0 0.0
    %46 = vmatpush1.msra.mxu0 0.0
    %47 = vmatprep.subr.mxu0 0.0
    %48 = vmatpush1.msra.mxu0 0.0
    %49 = vmatprep.subr.mxu0 0.0
    %50 = vmatpush1.msra.mxu0 0.0
    %51 = vmatprep.subr.mxu0 0.0
    %52 = vmatpush1.msra.mxu0 0.0
    %53 = vmatprep.subr.mxu0 0.0
    %54 = vmatpush1.msra.mxu0 0.0
    %55 = vmatprep.subr.mxu0 0.0
    %56 = vmatpush1.msra.mxu0 0.0
    %57 = vmatprep.subr.mxu0 0.0
    %58 = vmatpush1.msra.mxu0 0.0
    %59 = vmatprep.subr.mxu0 0.0
    %60 = vmatpush1.msra.mxu0 0.0
    %61 = vmatprep.subr.mxu0 0.0
    %62 = vmatpush1.msra.mxu0 0.0
    %63 = vmatprep.subr.mxu0 0.0
    %64 = vmatpush1.msra.mxu0 0.0
    %65 = vmatprep.subr.mxu0 0.0
    %66 = vmatpush1.msra.mxu0 0.0
    %67 = vmatprep.subr.mxu0 0.0
    %68 = vmatpush1.msra.mxu0 0.0
    %69 = vmatprep.subr.mxu0 0.0
    %70 = vmatpush1.msra.mxu0 0.0
    %71 = vmatprep.subr.mxu0 0.0
    %72 = vmatpush1.msra.mxu0 0.0
    %73 = vmatprep.subr.mxu0 0.0
    %74 = vmatpush1.msra.mxu0 0.0
    %75 = vmatprep.subr.mxu0 0.0
    %76 = vmatpush1.msra.mxu0 0.0
    %77 = vmatprep.subr.mxu0 0.0
    %78 = vmatpush1.msra.mxu0 0.0
    %79 = vmatprep.subr.mxu0 0.0
    %80 = vmatpush1.msra.mxu0 0.0
    %81 = vmatprep.subr.mxu0 0.0
    %82 = vmatpush1.msra.mxu0 0.0
    %83 = vmatprep.subr.mxu0 0.0
    %84 = vmatpush1.msra.mxu0 0.0
    %85 = vmatprep.subr.mxu0 0.0
    %86 = vmatpush1.msra.mxu0 0.0
    %87 = vmatprep.subr.mxu0 0.0
    %88 = vmatpush1.msra.mxu0 0.0
    %89 = vmatprep.subr.mxu0 0.0
    %90 = vmatpush1.msra.mxu0 0.0
    %91 = vmatprep.subr.mxu0 0.0
    %92 = vmatpush1.msra.mxu0 0.0
    %93 = vmatprep.subr.mxu0 0.0
    %94 = vmatpush1.msra.mxu0 0.0
    %95 = vmatprep.subr.mxu0 0.0
    %96 = vmatpush1.msra.mxu0 0.0
    %97 = vmatprep.subr.mxu0 0.0
    %98 = vmatpush1.msra.mxu0 0.0
    %99 = vmatprep.mubr.f32.mxu0 0.0
    %100 = vmatmul.mubr.f32.gmra.mrb[0].mxu0 %v30
    %v101 = vpop.f32.mrb[0].mxu0
    %v102 = vadd.f32 %v26, %v101
    %v103 = vpop.f32.mrb[0].mxu0
    %104 = vmatprep.mubr.f32.mxu0 0.0
    %105 = vmatmul.mubr.f32.gmra.mrb[0].mxu0 %v33
    %v106 = vpop.f32.mrb[0].mxu0
    %v107 = vadd.f32 %v26, %v106
    %v108 = vpop.f32.mrb[0].mxu0
    %109 = vdwg.mxu0
    %110 = vxpose.xlu0.b32.start [1/16] %v102, 128
    %111 = vxpose.xlu0.b32.cont [2/16] 0.0, 128
    %112 = vxpose.xlu0.b32.cont [3/16] 0.0, 128
    %113 = vxpose.xlu0.b32.cont [4/16] 0.0, 128
    %114 = vxpose.xlu0.b32.cont [5/16] 0.0, 128
    %115 = vxpose.xlu0.b32.cont [6/16] 0.0, 128
    %116 = vxpose.xlu0.b32.cont [7/16] 0.0, 128
    %117 = vxpose.xlu0.b32.cont [8/16] 0.0, 128
    %118 = vxpose.xlu0.b32.cont [9/16] 0.0, 128
    %119 = vxpose.xlu0.b32.cont [10/16] 0.0, 128
    %120 = vxpose.xlu0.b32.cont [11/16] 0.0, 128
    %121 = vxpose.xlu0.b32.cont [12/16] 0.0, 128
    %122 = vxpose.xlu0.b32.cont [13/16] 0.0, 128
    %123 = vxpose.xlu0.b32.cont [14/16] 0.0, 128
    %124 = vxpose.xlu0.b32.cont [15/16] 0.0, 128
    %125 = vxpose.xlu0.b32.end [16/16] 0.0, 128
    %v126 = vpop.trf.xlu0
    %v127 = vpop.trf.xlu0
    %v128 = vpop.trf.xlu0
    %v129 = vpop.trf.xlu0
    %v130 = vpop.trf.xlu0
    %v131 = vpop.trf.xlu0
    %v132 = vpop.trf.xlu0
    %v133 = vpop.trf.xlu0
    %v134 = vpop.trf.xlu0
    %v135 = vpop.trf.xlu0
    %v136 = vpop.trf.xlu0
    %v137 = vpop.trf.xlu0
    %v138 = vpop.trf.xlu0
    %v139 = vpop.trf.xlu0
    %v140 = vpop.trf.xlu0
    %v141 = vpop.trf.xlu0
    %142 = vxpose.xlu0.b32.start [1/16] %v107, 128
    %143 = vxpose.xlu0.b32.cont [2/16] 0.0, 128
    %144 = vxpose.xlu0.b32.cont [3/16] 0.0, 128
    %145 = vxpose.xlu0.b32.cont [4/16] 0.0, 128
    %146 = vxpose.xlu0.b32.cont [5/16] 0.0, 128
    %147 = vxpose.xlu0.b32.cont [6/16] 0.0, 128
    %148 = vxpose.xlu0.b32.cont [7/16] 0.0, 128
    %149 = vxpose.xlu0.b32.cont [8/16] 0.0, 128
    %150 = vxpose.xlu0.b32.cont [9/16] 0.0, 128
    %151 = vxpose.xlu0.b32.cont [10/16] 0.0, 128
    %152 = vxpose.xlu0.b32.cont [11/16] 0.0, 128
    %153 = vxpose.xlu0.b32.cont [12/16] 0.0, 128
    %154 = vxpose.xlu0.b32.cont [13/16] 0.0, 128
    %155 = vxpose.xlu0.b32.cont [14/16] 0.0, 128
    %156 = vxpose.xlu0.b32.cont [15/16] 0.0, 128
    %157 = vxpose.xlu0.b32.end [16/16] 0.0, 128
    %v158 = vpop.trf.xlu0
    %v159 = vpop.trf.xlu0
    %v160 = vpop.trf.xlu0
    %v161 = vpop.trf.xlu0
    %v162 = vpop.trf.xlu0
    %v163 = vpop.trf.xlu0
    %v164 = vpop.trf.xlu0
    %v165 = vpop.trf.xlu0
    %v166 = vpop.trf.xlu0
    %v167 = vpop.trf.xlu0
    %v168 = vpop.trf.xlu0
    %v169 = vpop.trf.xlu0
    %v170 = vpop.trf.xlu0
    %v171 = vpop.trf.xlu0
    %v172 = vpop.trf.xlu0
    %v173 = vpop.trf.xlu0
    %vm174 = vcmask 60416
    %v175 = vsel %vm174, %v126, -inf
    %176 = vmax.xlane.f32.xlu0 %v175
    %v177 = vpop.xlane.xlu0 %176
    %v178 = vsel %vm174, %v158, -inf
    %179 = vmax.xlane.f32.xlu0 %v178
    %v180 = vpop.xlane.xlu0 %179
    %v181 = vsub.f32 %v126, %v177
    %v182 = vsub.f32 %v158, %v180
    %v183 = vmul.f32 %v181, 1.442695
    %v184 = vpow.pop %v183
    %v185 = vmul.f32 %v182, 1.442695
    %v186 = vpow.pop %v185
    %v187 = vsel %vm174, %v184, 0.0
    %188 = vadd.xlane.f32.xlu0 %v187
    %v189 = vpop.xlane.xlu0 %188
    %v190 = vsel %vm174, %v186, 0.0
    %191 = vadd.xlane.f32.xlu0 %v190
    %v192 = vpop.xlane.xlu0 %191
    %v193 = vrcp.pop %v189
    %v194 = vrcp.pop %v192
    %v195 = vmul.f32 %v184, %v193
    %v196 = vmul.f32 %v186, %v194
    %vm197 = vcmask 64512
    %v199 = vsel %vm197, %v195, 0
    %201 = vmatprep.subr.mxu0 0.0
    %202 = vmatpush1.msra.mxu0 %v15
    %203 = vmatprep.subr.mxu0 0.0
    %204 = vmatpush1.msra.mxu0 0.0
    %205 = vmatprep.subr.mxu0 0.0
    %206 = vmatpush1.msra.mxu0 0.0
    %207 = vmatprep.subr.mxu0 0.0
    %208 = vmatpush1.msra.mxu0 0.0
    %209 = vmatprep.subr.mxu0 0.0
    %210 = vmatpush1.msra.mxu0 0.0
    %211 = vmatprep.subr.mxu0 0.0
    %212 = vmatpush1.msra.mxu0 0.0
    %213 = vmatprep.subr.mxu0 0.0
    %214 = vmatpush1.msra.mxu0 0.0
    %215 = vmatprep.subr.mxu0 0.0
    %216 = vmatpush1.msra.mxu0 0.0
    %217 = vmatprep.subr.mxu0 0.0
    %218 = vmatpush1.msra.mxu0 0.0
    %219 = vmatprep.subr.mxu0 0.0
    %220 = vmatpush1.msra.mxu0 0.0
    %221 = vmatprep.subr.mxu0 0.0
    %222 = vmatpush1.msra.mxu0 0.0
    %223 = vmatprep.subr.mxu0 0.0
    %224 = vmatpush1.msra.mxu0 0.0
    %225 = vmatprep.subr.mxu0 0.0
    %226 = vmatpush1.msra.mxu0 0.0
    %227 = vmatprep.subr.mxu0 0.0
    %228 = vmatpush1.msra.mxu0 0.0
    %229 = vmatprep.subr.mxu0 0.0
    %230 = vmatpush1.msra.mxu0 0.0
    %231 = vmatprep.subr.mxu0 0.0
    %232 = vmatpush1.msra.mxu0 0.0
    %233 = vmatprep.subr.mxu0 0.0
    %234 = vmatpush1.msra.mxu0 0.0
    %235 = vmatprep.subr.mxu0 0.0
    %236 = vmatpush1.msra.mxu0 0.0
    %237 = vmatprep.subr.mxu0 0.0
    %238 = vmatpush1.msra.mxu0 0.0
    %239 = vmatprep.subr.mxu0 0.0
    %240 = vmatpush1.msra.mxu0 0.0
    %241 = vmatprep.subr.mxu0 0.0
    %242 = vmatpush1.msra.mxu0 0.0
    %243 = vmatprep.subr.mxu0 0.0
    %244 = vmatpush1.msra.mxu0 0.0
    %245 = vmatprep.subr.mxu0 0.0
    %246 = vmatpush1.msra.mxu0 0.0
    %247 = vmatprep.subr.mxu0 0.0
    %248 = vmatpush1.msra.mxu0 0.0
    %249 = vmatprep.subr.mxu0 0.0
    %250 = vmatpush1.msra.mxu0 0.0
    %251 = vmatprep.subr.mxu0 0.0
    %252 = vmatpush1.msra.mxu0 0.0
    %253 = vmatprep.subr.mxu0 0.0
    %254 = vmatpush1.msra.mxu0 0.0
    %255 = vmatprep.subr.mxu0 0.0
    %256 = vmatpush1.msra.mxu0 0.0
    %257 = vmatprep.subr.mxu0 0.0
    %258 = vmatpush1.msra.mxu0 0.0
    %259 = vmatprep.subr.mxu0 0.0
    %260 = vmatpush1.msra.mxu0 0.0
    %261 = vmatprep.subr.mxu0 0.0
    %262 = vmatpush1.msra.mxu0 0.0
    %263 = vmatprep.subr.mxu0 0.0
    %264 = vmatpush1.msra.mxu0 0.0
    %265 = vmatprep.mubr.f32.mxu0 0.0
    %266 = vmatmul.mubr.f32.gmra.mrb[0].mxu0 %v199
    %v267 = vpop.f32.mrb[0].mxu0
    %v268 = vadd.f32 0.0, %v267
    %v269 = vpop.f32.mrb[0].mxu0
    %270 = vdwg.mxu0
    %v272 = vsel %vm197, %v196, 0
    %274 = vmatprep.subr.mxu0 0.0
    %275 = vmatpush1.msra.mxu0 %v16
    %276 = vmatprep.subr.mxu0 0.0
    %277 = vmatpush1.msra.mxu0 0.0
    %278 = vmatprep.subr.mxu0 0.0
    %279 = vmatpush1.msra.mxu0 0.0
    %280 = vmatprep.subr.mxu0 0.0
    %281 = vmatpush1.msra.mxu0 0.0
    %282 = vmatprep.subr.mxu0 0.0
    %283 = vmatpush1.msra.mxu0 0.0
    %284 = vmatprep.subr.mxu0 0.0
    %285 = vmatpush1.msra.mxu0 0.0
    %286 = vmatprep.subr.mxu0 0.0
    %287 = vmatpush1.msra.mxu0 0.0
    %288 = vmatprep.subr.mxu0 0.0
    %289 = vmatpush1.msra.mxu0 0.0
    %290 = vmatprep.subr.mxu0 0.0
    %291 = vmatpush1.msra.mxu0 0.0
    %292 = vmatprep.subr.mxu0 0.0
    %293 = vmatpush1.msra.mxu0 0.0
    %294 = vmatprep.subr.mxu0 0.0
    %295 = vmatpush1.msra.mxu0 0.0
    %296 = vmatprep.subr.mxu0 0.0
    %297 = vmatpush1.msra.mxu0 0.0
    %298 = vmatprep.subr.mxu0 0.0
    %299 = vmatpush1.msra.mxu0 0.0
    %300 = vmatprep.subr.mxu0 0.0
    %301 = vmatpush1.msra.mxu0 0.0
    %302 = vmatprep.subr.mxu0 0.0
    %303 = vmatpush1.msra.mxu0 0.0
    %304 = vmatprep.subr.mxu0 0.0
    %305 = vmatpush1.msra.mxu0 0.0
    %306 = vmatprep.subr.mxu0 0.0
    %307 = vmatpush1.msra.mxu0 0.0
    %308 = vmatprep.subr.mxu0 0.0
    %309 = vmatpush1.msra.mxu0 0.0
    %310 = vmatprep.subr.mxu0 0.0
    %311 = vmatpush1.msra.mxu0 0.0
    %312 = vmatprep.subr.mxu0 0.0
    %313 = vmatpush1.msra.mxu0 0.0
    %314 = vmatprep.subr.mxu0 0.0
    %315 = vmatpush1.msra.mxu0 0.0
    %316 = vmatprep.subr.mxu0 0.0
    %317 = vmatpush1.msra.mxu0 0.0
    %318 = vmatprep.subr.mxu0 0.0
    %319 = vmatpush1.msra.mxu0 0.0
    %320 = vmatprep.subr.mxu0 0.0
    %321 = vmatpush1.msra.mxu0 0.0
    %322 = vmatprep.subr.mxu0 0.0
    %323 = vmatpush1.msra.mxu0 0.0
    %324 = vmatprep.subr.mxu0 0.0
    %325 = vmatpush1.msra.mxu0 0.0
    %326 = vmatprep.subr.mxu0 0.0
    %327 = vmatpush1.msra.mxu0 0.0
    %328 = vmatprep.subr.mxu0 0.0
    %329 = vmatpush1.msra.mxu0 0.0
    %330 = vmatprep.subr.mxu0 0.0
    %331 = vmatpush1.msra.mxu0 0.0
    %332 = vmatprep.subr.mxu0 0.0
    %333 = vmatpush1.msra.mxu0 0.0
    %334 = vmatprep.subr.mxu0 0.0
    %335 = vmatpush1.msra.mxu0 0.0
    %336 = vmatprep.subr.mxu0 0.0
    %337 = vmatpush1.msra.mxu0 0.0
    %338 = vmatprep.mubr.f32.mxu0 0.0
    %339 = vmatmul.mubr.f32.gmra.mrb[0].mxu0 %v272
    %v340 = vpop.f32.mrb[0].mxu0
    %v341 = vadd.f32 0.0, %v340
    %v342 = vpop.f32.mrb[0].mxu0
    %343 = vdwg.mxu0
    %vm344 = vcmask 257024
    %345 = vst.msk [vmem:[#allocation2] sm:$0xf] %vm344, %v268
    %346 = vst.msk [vmem:[#allocation2 + $0x4] sm:$0xf] %vm344, %v341
    // Predicated region
    $region14: #{tpu_custom_call.1} parent=1 // pred_check
      _
    $region15: #{tpu_custom_call.1} parent=1 // pred_check_branch
      %348 = sbr.rel (0) target = $region17
    $region16: #{tpu_custom_call.1} parent=1 // pred_region
      %s350 = ssub.s32 128, 128
      %351 = vsyncadd [#allocation3], %s350
      %s352 = sshll.u32 [#allocation2], 4
      %s353 = int_to_ptr.vmem [resolvable:$true] %s352
      %358 = dma.vmem_to_hbm [thread:$0]  %s353, 128, %s3, [#allocation3], 64, 64, 4
    $region17: #{tpu_custom_call.1} parent=1 // pred_fallthru
      _
    // Predicated region
    $region18: #{tpu_custom_call.1} parent=1 // pred_check
      _
    $region19: #{tpu_custom_call.1} parent=1 // pred_check_branch
      %360 = sbr.rel (0) target = $region21
    $region20: #{tpu_custom_call.1} parent=1 // pred_region
      %361 = dma.done [#allocation3], 128
    $region21: #{tpu_custom_call.1} parent=1 // pred_fallthru
      _
    %362 = vsyncpa [#allocation3], 1

</llo_original>
